<compile_context>
chip_gen: v5e
topology: v5e:2x2
jax: 0.10.0
libtpu: 0.0.40
codegen_flags: <defaults>
</compile_context>

<pallas_src>
import functools

import jax
import jax.numpy as jnp
from jax.experimental import pallas as pl
from jax.experimental.pallas import tpu as pltpu


_LANE = 128
_SUBLANE = 8
_MAX_D_BLOCK = 2048     # D-chunk size when input_size is tiled (multiple of 128)
_MXU_MIN_D = 256        # below this, VPU+XLU reduce instead of the MXU


def _round_up(a, b):
    return -(-a // b) * b


def _vmem_budget_bytes():
    """Generation-aware VMEM budget for kernel buffers."""
    try:
        cap = pltpu.get_tpu_info().vmem_capacity_bytes
    except Exception:
        cap = 64 * 1024 * 1024                      # conservative: v7x per-core VMEM
    # Use at most ~half of physical VMEM, capped: v7x (64 MiB) -> 32 MiB,
    # v5e/v6e (128 MiB) -> 48 MiB.  Leaves headroom for compiler scratch.
    return int(min(cap // 2, 48 * 1024 * 1024))


def _choose_tiles(n, d, budget_bytes):
    """Pick (tile_rows, d_block) so double-buffered tiles fit the VMEM budget.

    Accounting is deliberately conservative: lanes padded to a multiple of 128,
    f32 itemsize (in-kernel upcast / product temporaries), an extra x-sized
    slab for fused temporaries, plus the lane-padded (rows, 1) output buffers.
    """
    d_block = d if d <= _MAX_D_BLOCK else _MAX_D_BLOCK
    lanes = _round_up(d_block, _LANE)

    w_bytes = 2 * _SUBLANE * lanes * 4                # (1, d_block) weight blocks
    per_row = 3 * lanes * 4                           # x double-buffer + f32 temps
    per_row += 2 * _LANE * 4                          # (rows, 1) out block, lane-padded
    avail = max(budget_bytes - w_bytes - (1 << 20), per_row * _SUBLANE)

    rows = max(_SUBLANE, avail // per_row)
    if rows >= 1024:
        rows = (rows // 1024) * 1024
    else:
        rows = (rows // _SUBLANE) * _SUBLANE

    rows = min(rows, _round_up(n, _SUBLANE))
    # Keep >= 2 row tiles when there is enough work: lets the "parallel" batch
    # axis shard across both TensorCores on v7x (one extra ~0.35us step on
    # single-TC chips is noise).
    if n > 2 * _SUBLANE and -(-n // rows) < 2:
        rows = min(rows, _round_up(-(-n // 2), _SUBLANE))
    return int(rows), int(d_block)


def _logreg_kernel(x_ref, w_ref, b_ref, o_ref, *, d_total, d_block):
    # x_ref: (tile_rows, d_block) input-dtype VMEM block of x rows
    # w_ref: (1, d_block)        float32 VMEM block of the weight row (zero-padded tail)
    # b_ref: (1,)                float32 SMEM scalar
    # o_ref: (tile_rows, 1)      float32 VMEM block; doubles as the accumulator
    #                            across the D ("arbitrary") grid axis.
    k = pl.program_id(1)

    x = x_ref[...]
    if x.dtype != jnp.float32:
        x = x.astype(jnp.float32)          # bf16/f16 stay narrow in HBM, upcast here

    if d_total % d_block != 0:
        # Ragged last D-chunk: Pallas clamps the DMA, so out-of-bounds lanes hold
        # stale VMEM.  Zero them (cheap VPU select; weight tail is zero-padded too).
        col = jax.lax.broadcasted_iota(jnp.int32, x.shape, dimension=1)
        x = jnp.where(col + k * d_block < d_total, x, 0.0)

    if d_block >= _MXU_MIN_D:
        # MXU matvec chunk: (tile_rows, d_block) . (d_block,) -> (tile_rows, 1).
        partial = jax.lax.dot_general(
            x, w_ref[...],
            dimension_numbers=(((1,), (1,)), ((), ())),
            preferred_element_type=jnp.float32,
        )
    else:
        # Small D: exact-f32 VPU multiply + XLU lane reduce; still HBM-bound.
        partial = jnp.sum(x * w_ref[...], axis=-1, keepdims=True)

    @pl.when(k == 0)
    def _():
        o_ref[...] = partial + b_ref[0]

    @pl.when(k > 0)
    def _():
        o_ref[...] = o_ref[...] + partial


def logistic_regression_forward(x, weight, bias, *, tile_rows=None, d_block=None):
    """logits = x.float().reshape(-1, D) @ weight.T + bias  ->  (N, 1) float32.

    Args:
      x:      any shape reshapable to (-1, D).  bf16/f16 stay in storage dtype
              (in-kernel upcast); other dtypes are cast to float32 up front.
      weight: (1, D)   (PyTorch nn.Linear(D, 1) weight layout)
      bias:   (1,)
    """
    d = weight.shape[-1]

    # PyTorch glue: x.type(torch.FloatTensor).reshape(-1, D).
    if not jnp.issubdtype(x.dtype, jnp.floating) or x.dtype.itemsize > 4:
        x = x.astype(jnp.float32)
    x2 = x.reshape(-1, d)
    n = x2.shape[0]

    budget = _vmem_budget_bytes()
    auto_rows, auto_db = _choose_tiles(n, d, budget)
    if tile_rows is None:
        tile_rows = auto_rows
    if d_block is None:
        d_block = auto_db
    if tile_rows % _SUBLANE:
        raise ValueError(f"tile_rows must be a multiple of {_SUBLANE}")
    if d_block != d and d_block % _LANE:
        raise ValueError(f"d_block must equal D or be a multiple of {_LANE}")

    ni = -(-n // tile_rows)
    kd = -(-d // d_block)

    # Weight row in f32, zero-padded to kd * d_block (tiny copy; keeps the
    # ragged last D-chunk exact).  Bias as an SMEM scalar.
    w = weight.astype(jnp.float32).reshape(1, d)
    if kd * d_block != d:
        w = jnp.pad(w, ((0, 0), (0, kd * d_block - d)))
    b = bias.astype(jnp.float32).reshape(1)

    kernel = functools.partial(_logreg_kernel, d_total=d, d_block=d_block)

    out = pl.pallas_call(
        kernel,
        out_shape=jax.ShapeDtypeStruct((n, 1), jnp.float32),
        grid=(ni, kd),
        in_specs=[
            # No input pad: last row/D blocks are partial; Pallas clamps the DMA.
            pl.BlockSpec((tile_rows, d_block), lambda i, k: (i, k)),
            # Weight block index is constant across i, so the pipeline only
            # re-DMAs it when the D-chunk changes (resident when kd == 1).
            pl.BlockSpec((1, d_block), lambda i, k: (0, k)),
            pl.BlockSpec(memory_space=pltpu.MemorySpace.SMEM),
        ],
        # Same output block across k -> stays resident in VMEM and serves as the
        # f32 accumulator for the D reduction; ragged output rows are masked on
        # writeback so no trailing slice is needed.
        out_specs=pl.BlockSpec((tile_rows, 1), lambda i, k: (i, 0)),
        compiler_params=pltpu.CompilerParams(
            dimension_semantics=("parallel", "arbitrary"),
            vmem_limit_bytes=int(min(budget + (16 << 20), 96 * 1024 * 1024)),
        ),
    )(x2, w, b)

    return out


if __name__ == "__main__":
    input_size = 32
    batch = 8

    key = jax.random.PRNGKey(0)
    kx, kx2, kx3, kw, kb, kw2, kb2 = jax.random.split(key, 7)

    # nn.Linear(input_size, 1): weight (1, input_size), bias (1,)
    bound = 1.0 / (input_size ** 0.5)
    weight = jax.random.uniform(kw, (1, input_size), jnp.float32, -bound, bound)
    bias = jax.random.uniform(kb, (1,), jnp.float32, -bound, bound)

    # --- Test 1: small f32 batch (single row tile, single D chunk) ---
    x = jax.random.normal(kx, (batch, input_size), jnp.float32)
    logits = logistic_regression_forward(x, weight, bias)
    jax.block_until_ready(logits)
    ref = jnp.einsum("nd,od->no", x.reshape(-1, input_size), weight,
                     precision=jax.lax.Precision.HIGHEST) + bias
    assert logits.shape == (batch, 1)
    assert jnp.allclose(logits, ref, atol=1e-4, rtol=1e-4), "test1 mismatch"

    # --- Test 2: bf16 input, ragged N (no input pad), multiple row tiles ---
    batch2 = 2050
    x_bf16 = jax.random.normal(kx2, (batch2, input_size), jnp.float32).astype(jnp.bfloat16)
    logits2 = logistic_regression_forward(x_bf16, weight, bias)
    jax.block_until_ready(logits2)
    ref2 = jnp.einsum("nd,od->no", x_bf16.astype(jnp.float32), weight,
                      precision=jax.lax.Precision.HIGHEST) + bias
    assert logits2.shape == (batch2, 1)
    assert jnp.allclose(logits2, ref2, atol=1e-3, rtol=1e-3), "test2 mismatch"

    # --- Test 3: wide, ragged input_size -> exercises D-tiling + accumulator ---
    d3, n3 = 2200, 64                    # d3 > _MAX_D_BLOCK and not a multiple of it
    bound3 = 1.0 / (d3 ** 0.5)
    w3 = jax.random.uniform(kw2, (1, d3), jnp.float32, -bound3, bound3)
    b3 = jax.random.uniform(kb2, (1,), jnp.float32, -bound3, bound3)
    x3 = jax.random.normal(kx3, (n3, d3), jnp.float32)
    logits3 = logistic_regression_forward(x3, w3, b3)
    jax.block_until_ready(logits3)
    ref3 = jnp.einsum("nd,od->no", x3, w3,
                      precision=jax.lax.Precision.HIGHEST) + b3
    assert logits3.shape == (n3, 1)
    # Looser tolerance: kernel uses the MXU for this D (f32 operands).
    assert jnp.allclose(logits3, ref3, atol=1e-2, rtol=1e-2), "test3 mismatch"

    print("KERNEL_OK")
</pallas_src>

<mosaic_0001>
module attributes {stable_mosaic.version = 11 : i64} {
  func.func @_logreg_kernel(%arg0: i32, %arg1: i32, %arg2: memref<8x32xf32, #tpu.memory_space<vmem>>, %arg3: memref<1x32xf32, #tpu.memory_space<vmem>>, %arg4: memref<1xf32, #tpu.memory_space<smem>>, %arg5: memref<8x1xf32, #tpu.memory_space<vmem>>) attributes {dimension_semantics = [#tpu.dimension_semantics<parallel>, #tpu.dimension_semantics<arbitrary>], iteration_bounds = array<i64: 1, 1>, scalar_prefetch = 0 : i64, scratch_operands = 0 : i64, tpu.core_type = #tpu.core_type<tc>, window_params = [{transform_indices = @transform_0, window_bounds = array<i64: 8, 32>}, {transform_indices = @transform_1, window_bounds = array<i64: 1, 32>}, {transform_indices = @transform_2, window_bounds = array<i64: 1>}, {transform_indices = @transform_3, window_bounds = array<i64: 8, 1>}]} {
    %c0 = arith.constant 0 : index
    %c0_0 = arith.constant 0 : index
    %0 = vector.load %arg2[%c0, %c0_0] : memref<8x32xf32, #tpu.memory_space<vmem>>, vector<8x32xf32>
    %c0_1 = arith.constant 0 : index
    %c0_2 = arith.constant 0 : index
    %1 = vector.load %arg3[%c0_1, %c0_2] : memref<1x32xf32, #tpu.memory_space<vmem>>, vector<1x32xf32>
    %2 = vector.broadcast %1 : vector<1x32xf32> to vector<8x32xf32>
    %3 = arith.mulf %0, %2 : vector<8x32xf32>
    %cst = arith.constant dense<0.000000e+00> : vector<8xf32>
    %4 = vector.multi_reduction <add>, %3, %cst [1] : vector<8x32xf32> to vector<8xf32>
    %5 = vector.shape_cast %4 : vector<8xf32> to vector<8x1xf32>
    %c0_i32 = arith.constant 0 : i32
    %6 = arith.cmpi eq, %arg1, %c0_i32 : i32
    %7 = arith.extui %6 : i1 to i32
    %c0_i32_3 = arith.constant 0 : i32
    %8 = arith.cmpi ne, %7, %c0_i32_3 : i32
    scf.if %8 {
      %c0_6 = arith.constant 0 : index
      %12 = memref.load %arg4[%c0_6] : memref<1xf32, #tpu.memory_space<smem>>
      %13 = vector.broadcast %12 : f32 to vector<8x1xf32>
      %14 = arith.addf %5, %13 : vector<8x1xf32>
      %c0_7 = arith.constant 0 : index
      %c0_8 = arith.constant 0 : index
      %15 = vector.load %arg5[%c0_7, %c0_8] : memref<8x1xf32, #tpu.memory_space<vmem>>, vector<8x1xf32>
      tpu.vector_store %arg5[%c0_7, %c0_8], %14 {strides = array<i32>} : memref<8x1xf32, #tpu.memory_space<vmem>>, vector<8x1xf32>,
    } else {
    }
    %c0_i32_4 = arith.constant 0 : i32
    %9 = arith.cmpi sgt, %arg1, %c0_i32_4 : i32
    %10 = arith.extui %9 : i1 to i32
    %c0_i32_5 = arith.constant 0 : i32
    %11 = arith.cmpi ne, %10, %c0_i32_5 : i32
    scf.if %11 {
      %c0_6 = arith.constant 0 : index
      %c0_7 = arith.constant 0 : index
      %12 = vector.load %arg5[%c0_6, %c0_7] : memref<8x1xf32, #tpu.memory_space<vmem>>, vector<8x1xf32>
      %13 = arith.addf %12, %5 : vector<8x1xf32>
      %c0_8 = arith.constant 0 : index
      %c0_9 = arith.constant 0 : index
      %14 = vector.load %arg5[%c0_8, %c0_9] : memref<8x1xf32, #tpu.memory_space<vmem>>, vector<8x1xf32>
      tpu.vector_store %arg5[%c0_8, %c0_9], %13 {strides = array<i32>} : memref<8x1xf32, #tpu.memory_space<vmem>>, vector<8x1xf32>,
    } else {
    }
    return
  }
  func.func @transform_0(%arg0: i32, %arg1: i32) -> (i32, i32) {
    %c0_i32 = arith.constant 0 : i32
    return %arg0, %arg1 : i32, i32
  }
  func.func @transform_1(%arg0: i32, %arg1: i32) -> (i32, i32) {
    %c0_i32 = arith.constant 0 : i32
    %c0_i32_0 = arith.constant 0 : i32
    return %c0_i32, %arg1 : i32, i32
  }
  func.func @transform_2(%arg0: i32, %arg1: i32) -> i32 {
    %c0_i32 = arith.constant 0 : i32
    %c0_i32_0 = arith.constant 0 : i32
    return %c0_i32 : i32
  }
  func.func @transform_3(%arg0: i32, %arg1: i32) -> (i32, i32) {
    %c0_i32 = arith.constant 0 : i32
    %c0_i32_0 = arith.constant 0 : i32
    return %arg0, %c0_i32 : i32, i32
  }
}

</mosaic_0001>

<llo_original>
// kernel: tpu_custom_call.1
$region0: #{tpu_custom_call.1}
  #allocation0 [shape = 'u32[]', space=smem, size = 0x4, offset = 0x4, fixed_abs, tag = 'smem constant byte address 0x4 - core index']
  #allocation1 [shape = 'u32[72,128]{1,0:T(1,128)}', space=vmem, size = 0x9000, scoped, tag = 'internal scratch']
  #allocation2 [shape = 'f32[1]{0:T(128)S(6)}', space=smem, size = 0x200, scoped, tag = 'scoped memory for tpu_custom_call.1']
  %s0 = inlined_call_operand.hbm [shape: f32[8,32], index: 0, kind: input, shape index: {}]
  %s1 = inlined_call_operand.vmem [shape: f32[1,32], index: 1, kind: input, shape index: {}]
  %s2 = inlined_call_operand.<no memory space> [shape: f32[1], index: 2, kind: input, shape index: {}]
  %s3 = inlined_call_operand.vmem [shape: f32[8,1], index: 3, kind: output, shape index: {}]
  %s4 = sld [smem:[#allocation0]]
  $region34: #{tpu_custom_call.1} parent=0
    _
  %s6 = ssub.s32 1, %s4
  %s7 = scalar_select 0, %s6, %s4
  %8 = sst [smem:[#allocation2]] %s2
  $region1: #{tpu_custom_call.1} parent=0
    #allocation3 [shape = 'u8[4096]{0}', space=vmem, size = 0x1000, scoped, tag = 'input window, operand 0, single buffered']
    #allocation4 [shape = 's32[1]{0}', space=sflag, size = 0x4, scoped, tag = 'scoped memory for tpu_custom_call.1']
    %9 = vsyncpa [#allocation4], 0
    // Predicated region
    $region2: #{tpu_custom_call.1} parent=1 // pred_check
      _
    $region3: #{tpu_custom_call.1} parent=1 // pred_check_branch
      %11 = sbr.rel (0) target = $region5
    $region4: #{tpu_custom_call.1} parent=1 // pred_region
      %13 = vsyncadd [#allocation4], 0
      %s15 = sshll.u32 %s0, 4
      %s16 = int_to_ptr.hbm [resolvable:$true] %s15
      %s17 = sshll.u32 [#allocation3], 4
      %s18 = int_to_ptr.vmem [resolvable:$true] %s17
      %20 = dma.hbm_to_vmem [thread:$0]  %s16, 128, %s18, [#allocation4]
    $region5: #{tpu_custom_call.1} parent=1 // pred_fallthru
      _
    // Predicated region
    $region6: #{tpu_custom_call.1} parent=1 // pred_check
      _
    $region7: #{tpu_custom_call.1} parent=1 // pred_check_branch
      %22 = sbr.rel (0) target = $region9
    $region8: #{tpu_custom_call.1} parent=1 // pred_region
      _
    $region9: #{tpu_custom_call.1} parent=1 // pred_fallthru
      _
    // Predicated region
    $region10: #{tpu_custom_call.1} parent=1 // pred_check
      _
    $region11: #{tpu_custom_call.1} parent=1 // pred_check_branch
      %24 = sbr.rel (0) target = $region13
    $region12: #{tpu_custom_call.1} parent=1 // pred_region
      _
    $region13: #{tpu_custom_call.1} parent=1 // pred_fallthru
      _
    // Predicated region
    $region14: #{tpu_custom_call.1} parent=1 // pred_check
      _
    $region15: #{tpu_custom_call.1} parent=1 // pred_check_branch
      %26 = sbr.rel (0) target = $region17
    $region16: #{tpu_custom_call.1} parent=1 // pred_region
      %28 = dma.done [#allocation4], 128
    $region17: #{tpu_custom_call.1} parent=1 // pred_fallthru
      _
    %v29 = vld [vmem:[#allocation3] sm:$0xff]
    %v30 = vld [vmem:[%s1] sm:$0x1]
    %v32 = vperm.slane %v30, 0
    %v34 = vmul.f32 %v29, %v32
    %vm35 = vcmask 261120
    %v36 = vsel %vm35, %v34, 0.0
    %37 = vadd.xlane.f32.xlu0 %v36
    %v38 = vpop.xlane.xlu0 %37
    %p39 = scmp.eq.s32.totalorder 0, 0
    // Predicated region
    $region18: #{tpu_custom_call.1} parent=1 // pred_check
      %p40 = pneg %p39
    $region19: #{tpu_custom_call.1} parent=1 // pred_check_branch
      %42 = sbr.rel (%p40) target = $region21
    $region20: #{tpu_custom_call.1} parent=1 // pred_region
      %s43 = sld [smem:[#allocation2]]
      %v44 = vstv %s43
      %v45 = vadd.f32 %v38, %v44
      %vm46 = vcmask 7168
      %47 = vst.msk [vmem:[%s3] sm:$0xff] %vm46, %v45
    $region21: #{tpu_custom_call.1} parent=1 // pred_fallthru
      _
    %p48 = scmp.gt.s32.totalorder 0, 0
    // Predicated region
    $region22: #{tpu_custom_call.1} parent=1 // pred_check
      %p49 = pneg %p48
    $region23: #{tpu_custom_call.1} parent=1 // pred_check_branch
      %51 = sbr.rel (%p49) target = $region25
    $region24: #{tpu_custom_call.1} parent=1 // pred_region
      %v52 = vld [vmem:[%s3] sm:$0xff]
      %v53 = vadd.f32 %v52, %v38
      %vm54 = vcmask 7168
      %55 = vst.msk [vmem:[%s3] sm:$0xff] %vm54, %v53
    $region25: #{tpu_custom_call.1} parent=1 // pred_fallthru
      _
    // Predicated region
    $region26: #{tpu_custom_call.1} parent=1 // pred_check
      _
    $region27: #{tpu_custom_call.1} parent=1 // pred_check_branch
      %57 = sbr.rel (0) target = $region29
    $region28: #{tpu_custom_call.1} parent=1 // pred_region
      _
    $region29: #{tpu_custom_call.1} parent=1 // pred_fallthru
      _
    // Predicated region
    $region30: #{tpu_custom_call.1} parent=1 // pred_check
      _
    $region31: #{tpu_custom_call.1} parent=1 // pred_check_branch
      %59 = sbr.rel (0) target = $region33
    $region32: #{tpu_custom_call.1} parent=1 // pred_region
      _
    $region33: #{tpu_custom_call.1} parent=1 // pred_fallthru
      _
    %60 = vsyncpa [#allocation4], 1

</llo_original>
